<compile_context>
chip_gen: v6e
topology: v6e:2x2x1
jax: 0.10.0
libtpu: 0.0.40
codegen_flags: <defaults>
</compile_context>

<pallas_src>
import functools

import jax
import jax.numpy as jnp
import numpy as np
from jax.experimental import pallas as pl
from jax.experimental.pallas import tpu as pltpu

IN_DIM = 20
HID_DIM = 60
HID_PAD = 64                       # 60 -> 64 (K alignment only; do NOT pad to 128)
HEAD_DIM = 20
N_HEADS = 40                       # 20 pairs of (_p, _c)
OUT_DIM = N_HEADS * HEAD_DIM       # 800 (lane dim; 6*128 + 32, one masked vst tail)


def _round_up(x, m):
    return ((x + m - 1) // m) * m


def _cdiv(a, b):
    return -(-a // b)


def _net_kernel(x_ref, w1_ref, b1_ref, wh_ref, bh_ref, out_ref):
    # Shared trunk: h = relu(x @ W1^T + b1)  -> (TB, 64), f32 accumulation.
    h = jnp.dot(x_ref[...], w1_ref[...],
                preferred_element_type=jnp.float32) + b1_ref[...]
    h = jnp.maximum(h, 0.0)

    # All 40 heads fused: relu(h @ Wheads + bheads) -> (TB, 800).
    o = jnp.dot(h.astype(jnp.bfloat16), wh_ref[...],
                preferred_element_type=jnp.float32) + bh_ref[...]
    out_ref[...] = jnp.maximum(o, 0.0).astype(out_ref.dtype)


def _choose_batch_tiling(B, block_b):
    """Pick (tb, b_pad) with <8 padded rows per grid step and >=2 steps when
    the batch is large enough for both v7x TensorCores to get work."""
    B8 = _round_up(max(B, 1), 8)
    n_steps = max(1, _cdiv(B8, block_b))
    if n_steps < 2 and B8 >= 16:
        n_steps = 2
    tb = _round_up(_cdiv(B8, n_steps), 8)
    n_steps = _cdiv(B8, tb)
    return tb, tb * n_steps


def net_forward(x, w1_t, b1, wheads_t, bheads, *, block_b=2048,
                out_dtype=jnp.float32):
    """x: (..., 20).  Packed params from pack_params().

    Returns the packed output (B, 800) in `out_dtype` (head order along the
    lane dim: fc1_p, fc1_c, fc2_p, fc2_c, ..., fc20_p, fc20_c, 20 lanes each).
    Use split_heads() at a cold boundary for PyTorch tuple parity.
    """
    x = x.reshape(-1, IN_DIM).astype(jnp.bfloat16)   # bf16 input read (small, free)
    B = x.shape[0]

    tb, b_pad = _choose_batch_tiling(B, block_b)
    if b_pad != B:
        x = jnp.pad(x, ((0, b_pad - B), (0, 0)))

    grid = (b_pad // tb,)

    out_bytes = jnp.dtype(out_dtype).itemsize
    weight_bytes = (IN_DIM * HID_PAD + HID_PAD * OUT_DIM) * 2 \
        + (HID_PAD + OUT_DIM) * 4
    cost = pl.CostEstimate(
        flops=2 * b_pad * (IN_DIM * HID_PAD + HID_PAD * OUT_DIM),
        transcendentals=0,
        bytes_accessed=b_pad * IN_DIM * 2 + b_pad * OUT_DIM * out_bytes
        + weight_bytes,
    )

    # Real VMEM footprint: double-buffered x and out tiles + resident weights,
    # plus headroom.  Keep well below v7x's 64 MiB physical / 32 MiB scoped.
    footprint = 2 * (tb * IN_DIM * 2) + 2 * (tb * OUT_DIM * out_bytes) \
        + 2 * weight_bytes
    vmem_limit = min(32 * 1024 * 1024, _round_up(int(footprint * 1.5), 1 << 20)
                     + 2 * 1024 * 1024)

    out = pl.pallas_call(
        _net_kernel,
        out_shape=jax.ShapeDtypeStruct((b_pad, OUT_DIM), out_dtype),
        grid=grid,
        in_specs=[
            pl.BlockSpec((tb, IN_DIM), lambda i: (i, 0)),        # x tile (bf16)
            pl.BlockSpec((IN_DIM, HID_PAD), lambda i: (0, 0)),   # W1^T   (resident)
            pl.BlockSpec((1, HID_PAD), lambda i: (0, 0)),        # b1     (resident)
            pl.BlockSpec((HID_PAD, OUT_DIM), lambda i: (0, 0)),  # Wheads (resident)
            pl.BlockSpec((1, OUT_DIM), lambda i: (0, 0)),        # bheads (resident)
        ],
        out_specs=pl.BlockSpec((tb, OUT_DIM), lambda i: (i, 0)),
        compiler_params=pltpu.CompilerParams(
            dimension_semantics=("parallel",),
            vmem_limit_bytes=vmem_limit,
        ),
        cost_estimate=cost,
    )(x, w1_t, b1, wheads_t, bheads)

    if b_pad != B:
        out = out[:B]          # row slice only (cheap, contiguous); no lane slice
    return out                 # (B, 800) packed — keep packed in the hot path


def split_heads(packed):
    """Cold-boundary PyTorch-parity split: (B, 800) -> 40-tuple of (B, 1, 20).

    Do NOT call this in a performance-critical loop: it relayouts the minor dim
    and emits 40 tiny slices."""
    B = packed.shape[0]
    p = packed.reshape(B, N_HEADS, HEAD_DIM)
    return tuple(p[:, i, :].reshape(B, 1, HEAD_DIM) for i in range(N_HEADS))


def pack_params(w1, b1, head_ws, head_bs):
    """Pack PyTorch-layout weights into the padded, packed kernel layout.

    w1: (60, 20), b1: (60,), head_ws: 40 x (20, 60), head_bs: 40 x (20,)
    Returns (w1_t, b1_p, wheads_t, bheads_p):
      w1_t     (20, 64)  bf16   (zero-padded hidden dim)
      b1_p     (1, 64)   f32
      wheads_t (64, 800) bf16   (zero-padded K only; N stays 800)
      bheads_p (1, 800)  f32
    """
    w1_t = jnp.zeros((IN_DIM, HID_PAD), jnp.float32).at[:, :HID_DIM].set(w1.T)
    b1_p = jnp.zeros((1, HID_PAD), jnp.float32).at[0, :HID_DIM].set(b1)

    wh = jnp.concatenate([w.T for w in head_ws], axis=1)          # (60, 800)
    wheads_t = (jnp.zeros((HID_PAD, OUT_DIM), jnp.float32)
                .at[:HID_DIM, :].set(wh))
    bheads_p = jnp.concatenate(head_bs, axis=0).reshape(1, OUT_DIM)

    return (w1_t.astype(jnp.bfloat16), b1_p,
            wheads_t.astype(jnp.bfloat16), bheads_p)


def init_raw_params(key):
    """Deterministic PyTorch-style (uniform +/- 1/sqrt(fan_in)) init, f32."""
    keys = jax.random.split(key, 2 + 2 * N_HEADS)
    bound1 = 1.0 / float(np.sqrt(IN_DIM))
    w1 = jax.random.uniform(keys[0], (HID_DIM, IN_DIM), jnp.float32, -bound1, bound1)
    b1 = jax.random.uniform(keys[1], (HID_DIM,), jnp.float32, -bound1, bound1)

    bound_h = 1.0 / float(np.sqrt(HID_DIM))
    head_ws, head_bs = [], []
    for i in range(N_HEADS):
        head_ws.append(jax.random.uniform(keys[2 + 2 * i], (HEAD_DIM, HID_DIM),
                                          jnp.float32, -bound_h, bound_h))
        head_bs.append(jax.random.uniform(keys[3 + 2 * i], (HEAD_DIM,),
                                          jnp.float32, -bound_h, bound_h))
    return w1, b1, head_ws, head_bs


def reference_forward(x, w1, b1, head_ws, head_bs):
    """Pure-JAX f32 reference (eval-mode dropout = identity). Returns (B, 800)."""
    x = x.reshape(-1, IN_DIM)
    h = jnp.maximum(x @ w1.T + b1, 0.0)
    outs = [jnp.maximum(h @ w.T + b, 0.0) for w, b in zip(head_ws, head_bs)]
    return jnp.concatenate(outs, axis=1)   # (B, 800), same packing as kernel


if __name__ == "__main__":
    key = jax.random.PRNGKey(0)
    pkey, xkey, xkey2 = jax.random.split(key, 3)

    w1, b1, head_ws, head_bs = init_raw_params(pkey)
    w1_t, b1_p, wheads_t, bheads_p = pack_params(w1, b1, head_ws, head_bs)

    fwd = jax.jit(functools.partial(net_forward, block_b=2048))

    # Small-batch check (single grid step).
    B = 2
    x = jax.random.normal(xkey, (B, IN_DIM), jnp.float32)
    out = jax.block_until_ready(fwd(x, w1_t, b1_p, wheads_t, bheads_p))
    assert out.shape == (B, OUT_DIM)
    assert out.dtype == jnp.float32
    ref = reference_forward(x, w1, b1, head_ws, head_bs)
    np.testing.assert_allclose(np.asarray(out), np.asarray(ref),
                               rtol=2e-2, atol=2e-2)

    # Multi-step grid check (exercises the >=2-step / small-pad tiling path).
    B2 = 24
    x2 = jax.random.normal(xkey2, (B2, IN_DIM), jnp.float32)
    out2 = jax.block_until_ready(fwd(x2, w1_t, b1_p, wheads_t, bheads_p))
    assert out2.shape == (B2, OUT_DIM)
    ref2 = reference_forward(x2, w1, b1, head_ws, head_bs)
    np.testing.assert_allclose(np.asarray(out2), np.asarray(ref2),
                               rtol=2e-2, atol=2e-2)

    # API-parity split (cold path only).
    heads = split_heads(out)
    assert len(heads) == N_HEADS
    assert all(h.shape == (B, 1, HEAD_DIM) for h in heads)

    print("KERNEL_OK")
</pallas_src>

<mosaic_0001>
module attributes {stable_mosaic.version = 11 : i64} {
  func.func @_net_kernel(%arg0: i32, %arg1: memref<8x20xbf16, #tpu.memory_space<vmem>>, %arg2: memref<20x64xbf16, #tpu.memory_space<vmem>>, %arg3: memref<1x64xf32, #tpu.memory_space<vmem>>, %arg4: memref<64x800xbf16, #tpu.memory_space<vmem>>, %arg5: memref<1x800xf32, #tpu.memory_space<vmem>>, %arg6: memref<8x800xf32, #tpu.memory_space<vmem>>) attributes {dimension_semantics = [#tpu.dimension_semantics<parallel>], iteration_bounds = array<i64: 1>, scalar_prefetch = 0 : i64, scratch_operands = 0 : i64, tpu.core_type = #tpu.core_type<tc>, window_params = [{transform_indices = @transform_0, window_bounds = array<i64: 8, 20>}, {pipeline_mode = #tpu.pipeline_mode<synchronous>, transform_indices = @transform_1, window_bounds = array<i64: 20, 64>}, {pipeline_mode = #tpu.pipeline_mode<synchronous>, transform_indices = @transform_2, window_bounds = array<i64: 1, 64>}, {pipeline_mode = #tpu.pipeline_mode<synchronous>, transform_indices = @transform_3, window_bounds = array<i64: 64, 800>}, {pipeline_mode = #tpu.pipeline_mode<synchronous>, transform_indices = @transform_4, window_bounds = array<i64: 1, 800>}, {transform_indices = @transform_5, window_bounds = array<i64: 8, 800>}]} {
    %c0 = arith.constant 0 : index
    %c0_0 = arith.constant 0 : index
    %0 = vector.load %arg1[%c0, %c0_0] : memref<8x20xbf16, #tpu.memory_space<vmem>>, vector<8x20xbf16>
    %c0_1 = arith.constant 0 : index
    %c0_2 = arith.constant 0 : index
    %1 = vector.load %arg2[%c0_1, %c0_2] : memref<20x64xbf16, #tpu.memory_space<vmem>>, vector<20x64xbf16>
    %cst = arith.constant dense<0.000000e+00> : vector<8x64xf32>
    %2 = tpu.matmul %0, %1, %cst {dimension_numbers = #tpu.dot_dimension_numbers<[1], [0], [0], [1], [0, 0, 1, 1], [], []>} : vector<8x20xbf16>, vector<20x64xbf16>, vector<8x64xf32> -> vector<8x64xf32>
    %c0_3 = arith.constant 0 : index
    %c0_4 = arith.constant 0 : index
    %3 = vector.load %arg3[%c0_3, %c0_4] : memref<1x64xf32, #tpu.memory_space<vmem>>, vector<1x64xf32>
    %4 = vector.broadcast %3 : vector<1x64xf32> to vector<8x64xf32>
    %5 = arith.addf %2, %4 : vector<8x64xf32>
    %cst_5 = arith.constant 0.000000e+00 : f32
    %6 = vector.broadcast %cst_5 : f32 to vector<8x64xf32>
    %7 = arith.maximumf %5, %6 : vector<8x64xf32>
    %8 = arith.truncf %7 : vector<8x64xf32> to vector<8x64xbf16>
    %c0_6 = arith.constant 0 : index
    %c0_7 = arith.constant 0 : index
    %9 = vector.load %arg4[%c0_6, %c0_7] : memref<64x800xbf16, #tpu.memory_space<vmem>>, vector<64x800xbf16>
    %cst_8 = arith.constant dense<0.000000e+00> : vector<8x800xf32>
    %10 = tpu.matmul %8, %9, %cst_8 {dimension_numbers = #tpu.dot_dimension_numbers<[1], [0], [0], [1], [0, 0, 1, 1], [], []>} : vector<8x64xbf16>, vector<64x800xbf16>, vector<8x800xf32> -> vector<8x800xf32>
    %c0_9 = arith.constant 0 : index
    %c0_10 = arith.constant 0 : index
    %11 = vector.load %arg5[%c0_9, %c0_10] : memref<1x800xf32, #tpu.memory_space<vmem>>, vector<1x800xf32>
    %12 = vector.broadcast %11 : vector<1x800xf32> to vector<8x800xf32>
    %13 = arith.addf %10, %12 : vector<8x800xf32>
    %cst_11 = arith.constant 0.000000e+00 : f32
    %14 = vector.broadcast %cst_11 : f32 to vector<8x800xf32>
    %15 = arith.maximumf %13, %14 : vector<8x800xf32>
    %c0_12 = arith.constant 0 : index
    %c0_13 = arith.constant 0 : index
    %16 = vector.load %arg6[%c0_12, %c0_13] : memref<8x800xf32, #tpu.memory_space<vmem>>, vector<8x800xf32>
    tpu.vector_store %arg6[%c0_12, %c0_13], %15 {strides = array<i32>} : memref<8x800xf32, #tpu.memory_space<vmem>>, vector<8x800xf32>,
    return
  }
  func.func @transform_0(%arg0: i32) -> (i32, i32) {
    %c0_i32 = arith.constant 0 : i32
    %c0_i32_0 = arith.constant 0 : i32
    return %arg0, %c0_i32 : i32, i32
  }
  func.func @transform_1(%arg0: i32) -> (i32, i32) {
    %c0_i32 = arith.constant 0 : i32
    %c0_i32_0 = arith.constant 0 : i32
    %c0_i32_1 = arith.constant 0 : i32
    return %c0_i32, %c0_i32_0 : i32, i32
  }
  func.func @transform_2(%arg0: i32) -> (i32, i32) {
    %c0_i32 = arith.constant 0 : i32
    %c0_i32_0 = arith.constant 0 : i32
    %c0_i32_1 = arith.constant 0 : i32
    return %c0_i32, %c0_i32_0 : i32, i32
  }
  func.func @transform_3(%arg0: i32) -> (i32, i32) {
    %c0_i32 = arith.constant 0 : i32
    %c0_i32_0 = arith.constant 0 : i32
    %c0_i32_1 = arith.constant 0 : i32
    return %c0_i32, %c0_i32_0 : i32, i32
  }
  func.func @transform_4(%arg0: i32) -> (i32, i32) {
    %c0_i32 = arith.constant 0 : i32
    %c0_i32_0 = arith.constant 0 : i32
    %c0_i32_1 = arith.constant 0 : i32
    return %c0_i32, %c0_i32_0 : i32, i32
  }
  func.func @transform_5(%arg0: i32) -> (i32, i32) {
    %c0_i32 = arith.constant 0 : i32
    %c0_i32_0 = arith.constant 0 : i32
    return %arg0, %c0_i32 : i32, i32
  }
}

</mosaic_0001>

<llo_original>
// kernel: net_forward.1
$region0: #{net_forward.1}
  #allocation0 [shape = 'u32[]', space=smem, size = 0x4, offset = 0x4, fixed_abs, tag = 'smem constant byte address 0x4 - core index']
  #allocation1 [shape = 'u32[144,128]{1,0:T(1,128)}', space=vmem, size = 0x12000, scoped, tag = 'internal scratch']
  %s0 = inlined_call_operand.vmem [shape: bf16[8,20], index: 0, kind: input, shape index: {}]
  %s1 = inlined_call_operand.hbm [shape: bf16[20,64], index: 1, kind: input, shape index: {}]
  %s2 = inlined_call_operand.vmem [shape: f32[1,64], index: 2, kind: input, shape index: {}]
  %s3 = inlined_call_operand.hbm [shape: bf16[64,800], index: 3, kind: input, shape index: {}]
  %s4 = inlined_call_operand.vmem [shape: f32[1,800], index: 4, kind: input, shape index: {}]
  %s5 = inlined_call_operand.vmem [shape: f32[8,800], index: 5, kind: output, shape index: {}]
  %s6 = sld [smem:[#allocation0]]
  $region38: #{net_forward.1} parent=0
    _
  %s8 = ssub.s32 1, %s6
  %s9 = scalar_select 0, %s8, %s6
  $region1: #{net_forward.1} parent=0
    #allocation2 [shape = 'u8[6144]{0}', space=vmem, size = 0x1800, scoped, tag = 'input window, operand 1, single buffered']
    #allocation3 [shape = 's32[1]{0}', space=sflag, size = 0x4, scoped, tag = 'scoped memory for net_forward.1']
    #allocation4 [shape = 'u8[114688]{0}', space=vmem, size = 0x1c000, scoped, tag = 'input window, operand 3, single buffered']
    #allocation5 [shape = 's32[1]{0}', space=sflag, size = 0x4, scoped, tag = 'scoped memory for net_forward.1']
    %10 = vsyncpa [#allocation3], 0
    %11 = vsyncpa [#allocation5], 0
    // Predicated region
    $region2: #{net_forward.1} parent=1 // pred_check
      _
    $region3: #{net_forward.1} parent=1 // pred_check_branch
      %13 = sbr.rel (0) target = $region5
    $region4: #{net_forward.1} parent=1 // pred_region
      _
    $region5: #{net_forward.1} parent=1 // pred_fallthru
      _
    // Predicated region
    $region6: #{net_forward.1} parent=1 // pred_check
      _
    $region7: #{net_forward.1} parent=1 // pred_check_branch
      %15 = sbr.rel (0) target = $region9
    $region8: #{net_forward.1} parent=1 // pred_region
      %s17 = ssub.s32 192, 192
      %18 = vsyncadd [#allocation3], %s17
      %s19 = sshll.u32 [#allocation2], 4
      %s20 = int_to_ptr.vmem [resolvable:$true] %s19
      %25 = dma.hbm_to_vmem [thread:$0]  %s1, 192, %s20, [#allocation3], 64, 64, 4
    $region9: #{net_forward.1} parent=1 // pred_fallthru
      _
    // Predicated region
    $region10: #{net_forward.1} parent=1 // pred_check
      _
    $region11: #{net_forward.1} parent=1 // pred_check_branch
      %27 = sbr.rel (0) target = $region13
    $region12: #{net_forward.1} parent=1 // pred_region
      _
    $region13: #{net_forward.1} parent=1 // pred_fallthru
      _
    // Predicated region
    $region14: #{net_forward.1} parent=1 // pred_check
      _
    $region15: #{net_forward.1} parent=1 // pred_check_branch
      %29 = sbr.rel (0) target = $region17
    $region16: #{net_forward.1} parent=1 // pred_region
      %s31 = ssub.s32 3584, 3584
      %32 = vsyncadd [#allocation5], %s31
      %s33 = sshll.u32 [#allocation4], 4
      %s34 = int_to_ptr.vmem [resolvable:$true] %s33
      %39 = dma.hbm_to_vmem [thread:$0]  %s3, 3584, %s34, [#allocation5], 448, 448, 28
    $region17: #{net_forward.1} parent=1 // pred_fallthru
      _
    // Predicated region
    $region18: #{net_forward.1} parent=1 // pred_check
      _
    $region19: #{net_forward.1} parent=1 // pred_check_branch
      %41 = sbr.rel (0) target = $region21
    $region20: #{net_forward.1} parent=1 // pred_region
      _
    $region21: #{net_forward.1} parent=1 // pred_fallthru
      _
    // Predicated region
    $region22: #{net_forward.1} parent=1 // pred_check
      _
    $region23: #{net_forward.1} parent=1 // pred_check_branch
      %43 = sbr.rel (0) target = $region25
    $region24: #{net_forward.1} parent=1 // pred_region
      %44 = dma.done [#allocation3], 192
    $region25: #{net_forward.1} parent=1 // pred_fallthru
      _
    // Predicated region
    $region26: #{net_forward.1} parent=1 // pred_check
      _
    $region27: #{net_forward.1} parent=1 // pred_check_branch
      %46 = sbr.rel (0) target = $region29
    $region28: #{net_forward.1} parent=1 // pred_region
      %47 = dma.done [#allocation5], 3584
    $region29: #{net_forward.1} parent=1 // pred_fallthru
      _
    %v49 = vld [vmem:[%s0] sm:$0xf]
    %v50 = vld [vmem:[#allocation2] sm:$0xf]
    %v51 = vld [vmem:[#allocation2 + $0x4] sm:$0xf]
    %v52 = vld [vmem:[#allocation2 + $0x8] sm:$0x3]
    %v53 = vld [vmem:[%s2] sm:$0x1]
    %v55 = vlaneseq
    %v56 = vshrl.u32 %v55, 7
    %v57 = vsub.s32 0, %v56
    %v58 = vrot.slane %v53, %v57
    %v63 = vunpack.c.l.b16 %v50
    %v64 = vunpack.c.l.b16 %v51
    %v65 = vunpack.c.l.b16 %v52
    %v66 = vpack.c.b16 %v64, %v63
    %v67 = vpack.c.b16 %v65, %v65
    %vm69 = vcmask 162816
    %v71 = vsel %vm69, %v49, 0
    %vm73 = vcmask 1041408
    %v75 = vsel %vm73, %v67, 0
    %77 = vmatprep.subr.bf16.mxu0 0
    %78 = vmatpush1.bf16.msra.mxu0 0
    %79 = vmatprep.subr.bf16.mxu0 0
    %80 = vmatpush1.bf16.msra.mxu0 0
    %81 = vmatprep.subr.bf16.mxu0 0
    %82 = vmatpush1.bf16.msra.mxu0 0
    %83 = vmatprep.subr.bf16.mxu0 0
    %84 = vmatpush1.bf16.msra.mxu0 0
    %85 = vmatprep.subr.bf16.mxu0 0
    %86 = vmatpush1.bf16.msra.mxu0 0
    %87 = vmatprep.subr.bf16.mxu0 0
    %88 = vmatpush1.bf16.msra.mxu0 0
    %89 = vmatprep.subr.bf16.mxu0 0
    %90 = vmatpush1.bf16.msra.mxu0 %v75
    %91 = vmatprep.subr.bf16.mxu0 0
    %92 = vmatpush1.bf16.msra.mxu0 %v66
    %93 = vmatprep.subr.bf16.mxu0 0
    %94 = vmatpush2.bf16.msra.mxu0 0
    %95 = vmatprep.subr.bf16.mxu0 0
    %96 = vmatpush2.bf16.msra.mxu0 0
    %97 = vmatprep.subr.bf16.mxu0 0
    %98 = vmatpush2.bf16.msra.mxu0 0
    %99 = vmatprep.subr.bf16.mxu0 0
    %100 = vmatpush2.bf16.msra.mxu0 0
    %101 = vmatprep.subr.bf16.mxu0 0
    %102 = vmatpush2.bf16.msra.mxu0 0
    %103 = vmatprep.subr.bf16.mxu0 0
    %104 = vmatpush2.bf16.msra.mxu0 0
    %105 = vmatprep.subr.bf16.mxu0 0
    %106 = vmatpush2.bf16.msra.mxu0 0
    %107 = vmatprep.subr.bf16.mxu0 0
    %108 = vmatpush2.bf16.msra.mxu0 0
    %109 = vmatprep.mubr.bf16.mxu0 0
    %110 = vmatmul.mubr.bf16.gmra.mxu0 %v71
    %v111 = vpop.f32.mrf.mxu0
    %v112 = vadd.f32 %v58, %v111
    %v113 = vpop.f32.mrf.mxu0
    %v114 = vpop.f32.mrf.mxu0
    %v115 = vpop.f32.mrf.mxu0
    %116 = vdwg.mxu0
    %v117 = vmax.f32 %v112, 0.0
    %v118 = vpack.c.bf16 %v117, %v117
    %v119 = vld [vmem:[#allocation4] sm:$0xff]
    %v120 = vld [vmem:[#allocation4 + $0x8] sm:$0xff]
    %v121 = vld [vmem:[#allocation4 + $0x10] sm:$0xff]
    %v122 = vld [vmem:[#allocation4 + $0x18] sm:$0xf]
    %v123 = vld [vmem:[#allocation4 + $0x1c] sm:$0xff]
    %v124 = vld [vmem:[#allocation4 + $0x24] sm:$0xff]
    %v125 = vld [vmem:[#allocation4 + $0x2c] sm:$0xff]
    %v126 = vld [vmem:[#allocation4 + $0x34] sm:$0xf]
    %v127 = vld [vmem:[#allocation4 + $0x38] sm:$0xff]
    %v128 = vld [vmem:[#allocation4 + $0x40] sm:$0xff]
    %v129 = vld [vmem:[#allocation4 + $0x48] sm:$0xff]
    %v130 = vld [vmem:[#allocation4 + $0x50] sm:$0xf]
    %v131 = vld [vmem:[#allocation4 + $0x54] sm:$0xff]
    %v132 = vld [vmem:[#allocation4 + $0x5c] sm:$0xff]
    %v133 = vld [vmem:[#allocation4 + $0x64] sm:$0xff]
    %v134 = vld [vmem:[#allocation4 + $0x6c] sm:$0xf]
    %v135 = vld [vmem:[#allocation4 + $0x70] sm:$0xff]
    %v136 = vld [vmem:[#allocation4 + $0x78] sm:$0xff]
    %v137 = vld [vmem:[#allocation4 + $0x80] sm:$0xff]
    %v138 = vld [vmem:[#allocation4 + $0x88] sm:$0xf]
    %v139 = vld [vmem:[#allocation4 + $0x8c] sm:$0xff]
    %v140 = vld [vmem:[#allocation4 + $0x94] sm:$0xff]
    %v141 = vld [vmem:[#allocation4 + $0x9c] sm:$0xff]
    %v142 = vld [vmem:[#allocation4 + $0xa4] sm:$0xf]
    %v143 = vld [vmem:[#allocation4 + $0xa8] sm:$0xff]
    %v144 = vld [vmem:[#allocation4 + $0xb0] sm:$0xff]
    %v145 = vld [vmem:[#allocation4 + $0xb8] sm:$0xff]
    %v146 = vld [vmem:[#allocation4 + $0xc0] sm:$0xf]
    %v147 = vld [vmem:[#allocation4 + $0xc4] sm:$0xff]
    %v148 = vld [vmem:[#allocation4 + $0xcc] sm:$0xff]
    %v149 = vld [vmem:[#allocation4 + $0xd4] sm:$0xff]
    %v150 = vld [vmem:[#allocation4 + $0xdc] sm:$0xf]
    %v151 = vld [vmem:[%s4] sm:$0x7f]
    %v153 = vlaneseq
    %v154 = vshrl.u32 %v153, 7
    %v155 = vsub.s32 0, %v154
    %v156 = vrot.slane %v151, %v155
    %v157 = vlaneseq
    %v158 = vshrl.u32 %v157, 7
    %v159 = vsub.s32 1, %v158
    %v160 = vrot.slane %v151, %v159
    %v161 = vlaneseq
    %v162 = vshrl.u32 %v161, 7
    %v163 = vsub.s32 2, %v162
    %v164 = vrot.slane %v151, %v163
    %v165 = vlaneseq
    %v166 = vshrl.u32 %v165, 7
    %v167 = vsub.s32 3, %v166
    %v168 = vrot.slane %v151, %v167
    %v169 = vlaneseq
    %v170 = vshrl.u32 %v169, 7
    %v171 = vsub.s32 4, %v170
    %v172 = vrot.slane %v151, %v171
    %v173 = vlaneseq
    %v174 = vshrl.u32 %v173, 7
    %v175 = vsub.s32 5, %v174
    %v176 = vrot.slane %v151, %v175
    %v177 = vlaneseq
    %v178 = vshrl.u32 %v177, 7
    %v179 = vsub.s32 6, %v178
    %v180 = vrot.slane %v151, %v179
    %v220 = vunpack.c.l.b16 %v119
    %v221 = vunpack.c.h.b16 %v119
    %v222 = vunpack.c.l.b16 %v120
    %v223 = vunpack.c.h.b16 %v120
    %v224 = vunpack.c.l.b16 %v121
    %v225 = vunpack.c.h.b16 %v121
    %v226 = vunpack.c.l.b16 %v122
    %v227 = vunpack.c.l.b16 %v123
    %v228 = vunpack.c.h.b16 %v123
    %v229 = vunpack.c.l.b16 %v124
    %v230 = vunpack.c.h.b16 %v124
    %v231 = vunpack.c.l.b16 %v125
    %v232 = vunpack.c.h.b16 %v125
    %v233 = vunpack.c.l.b16 %v126
    %v234 = vunpack.c.l.b16 %v127
    %v235 = vunpack.c.h.b16 %v127
    %v236 = vunpack.c.l.b16 %v128
    %v237 = vunpack.c.h.b16 %v128
    %v238 = vunpack.c.l.b16 %v129
    %v239 = vunpack.c.h.b16 %v129
    %v240 = vunpack.c.l.b16 %v130
    %v241 = vunpack.c.l.b16 %v131
    %v242 = vunpack.c.h.b16 %v131
    %v243 = vunpack.c.l.b16 %v132
    %v244 = vunpack.c.h.b16 %v132
    %v245 = vunpack.c.l.b16 %v133
    %v246 = vunpack.c.h.b16 %v133
    %v247 = vunpack.c.l.b16 %v134
    %v248 = vunpack.c.l.b16 %v135
    %v249 = vunpack.c.h.b16 %v135
    %v250 = vunpack.c.l.b16 %v136
    %v251 = vunpack.c.h.b16 %v136
    %v252 = vunpack.c.l.b16 %v137
    %v253 = vunpack.c.h.b16 %v137
    %v254 = vunpack.c.l.b16 %v138
    %v255 = vunpack.c.l.b16 %v139
    %v256 = vunpack.c.h.b16 %v139
    %v257 = vunpack.c.l.b16 %v140
    %v258 = vunpack.c.h.b16 %v140
    %v259 = vunpack.c.l.b16 %v141
    %v260 = vunpack.c.h.b16 %v141
    %v261 = vunpack.c.l.b16 %v142
    %v262 = vunpack.c.l.b16 %v143
    %v263 = vunpack.c.h.b16 %v143
    %v264 = vunpack.c.l.b16 %v144
    %v265 = vunpack.c.h.b16 %v144
    %v266 = vunpack.c.l.b16 %v145
    %v267 = vunpack.c.h.b16 %v145
    %v268 = vunpack.c.l.b16 %v146
    %v269 = vunpack.c.l.b16 %v147
    %v270 = vunpack.c.h.b16 %v147
    %v271 = vunpack.c.l.b16 %v148
    %v272 = vunpack.c.h.b16 %v148
    %v273 = vunpack.c.l.b16 %v149
    %v274 = vunpack.c.h.b16 %v149
    %v275 = vunpack.c.l.b16 %v150
    %v276 = vpack.c.b16 %v227, %v220
    %v277 = vpack.c.b16 %v228, %v221
    %v278 = vpack.c.b16 %v229, %v222
    %v279 = vpack.c.b16 %v230, %v223
    %v280 = vpack.c.b16 %v231, %v224
    %v281 = vpack.c.b16 %v232, %v225
    %v282 = vpack.c.b16 %v233, %v226
    %v283 = vpack.c.b16 %v241, %v234
    %v284 = vpack.c.b16 %v242, %v235
    %v285 = vpack.c.b16 %v243, %v236
    %v286 = vpack.c.b16 %v244, %v237
    %v287 = vpack.c.b16 %v245, %v238
    %v288 = vpack.c.b16 %v246, %v239
    %v289 = vpack.c.b16 %v247, %v240
    %v290 = vpack.c.b16 %v255, %v248
    %v291 = vpack.c.b16 %v256, %v249
    %v292 = vpack.c.b16 %v257, %v250
    %v293 = vpack.c.b16 %v258, %v251
    %v294 = vpack.c.b16 %v259, %v252
    %v295 = vpack.c.b16 %v260, %v253
    %v296 = vpack.c.b16 %v261, %v254
    %v297 = vpack.c.b16 %v269, %v262
    %v298 = vpack.c.b16 %v270, %v263
    %v299 = vpack.c.b16 %v271, %v264
    %v300 = vpack.c.b16 %v272, %v265
    %v301 = vpack.c.b16 %v273, %v266
    %v302 = vpack.c.b16 %v274, %v267
    %v303 = vpack.c.b16 %v275, %v268
    %vm332 = vcmask 523264
    %v334 = vsel %vm332, %v118, 0
    %336 = vmatprep.subr.bf16.mxu0 0
    %337 = vmatpush1.bf16.msra.mxu0 0
    %338 = vmatprep.subr.bf16.mxu0 0
    %339 = vmatpush1.bf16.msra.mxu0 0
    %340 = vmatprep.subr.bf16.mxu0 0
    %341 = vmatpush1.bf16.msra.mxu0 0
    %342 = vmatprep.subr.bf16.mxu0 0
    %343 = vmatpush1.bf16.msra.mxu0 0
    %344 = vmatprep.subr.bf16.mxu0 %v298
    %345 = vmatpush1.bf16.msra.mxu0 %v297
    %346 = vmatprep.subr.bf16.mxu0 %v291
    %347 = vmatpush1.bf16.msra.mxu0 %v290
    %348 = vmatprep.subr.bf16.mxu0 %v284
    %349 = vmatpush1.bf16.msra.mxu0 %v283
    %350 = vmatprep.subr.bf16.mxu0 %v277
    %351 = vmatpush1.bf16.msra.mxu0 %v276
    %352 = vmatprep.subr.bf16.mxu0 0
    %353 = vmatpush2.bf16.msra.mxu0 0
    %354 = vmatprep.subr.bf16.mxu0 0
    %355 = vmatpush2.bf16.msra.mxu0 0
    %356 = vmatprep.subr.bf16.mxu0 0
    %357 = vmatpush2.bf16.msra.mxu0 0
    %358 = vmatprep.subr.bf16.mxu0 0
    %359 = vmatpush2.bf16.msra.mxu0 0
    %360 = vmatprep.subr.bf16.mxu0 0
    %361 = vmatpush2.bf16.msra.mxu0 0
    %362 = vmatprep.subr.bf16.mxu0 0
    %363 = vmatpush2.bf16.msra.mxu0 0
    %364 = vmatprep.subr.bf16.mxu0 0
    %365 = vmatpush2.bf16.msra.mxu0 0
    %366 = vmatprep.subr.bf16.mxu0 0
    %367 = vmatpush2.bf16.msra.mxu0 0
    %368 = vmatprep.mubr.bf16.mxu0 0
    %369 = vmatmul.mubr.bf16.gmra.mxu0 %v334
    %v370 = vpop.f32.mrf.mxu0
    %v371 = vadd.f32 %v156, %v370
    %v372 = vpop.f32.mrf.mxu0
    %v373 = vadd.f32 %v160, %v372
    %v374 = vpop.f32.mrf.mxu0
    %v375 = vpop.f32.mrf.mxu0
    %376 = vdwg.mxu0
    %377 = vmatprep.subr.bf16.mxu0 0
    %378 = vmatpush1.bf16.msra.mxu0 0
    %379 = vmatprep.subr.bf16.mxu0 0
    %380 = vmatpush1.bf16.msra.mxu0 0
    %381 = vmatprep.subr.bf16.mxu0 0
    %382 = vmatpush1.bf16.msra.mxu0 0
    %383 = vmatprep.subr.bf16.mxu0 0
    %384 = vmatpush1.bf16.msra.mxu0 0
    %385 = vmatprep.subr.bf16.mxu0 %v300
    %386 = vmatpush1.bf16.msra.mxu0 %v299
    %387 = vmatprep.subr.bf16.mxu0 %v293
    %388 = vmatpush1.bf16.msra.mxu0 %v292
    %389 = vmatprep.subr.bf16.mxu0 %v286
    %390 = vmatpush1.bf16.msra.mxu0 %v285
    %391 = vmatprep.subr.bf16.mxu0 %v279
    %392 = vmatpush1.bf16.msra.mxu0 %v278
    %393 = vmatprep.subr.bf16.mxu0 0
    %394 = vmatpush2.bf16.msra.mxu0 0
    %395 = vmatprep.subr.bf16.mxu0 0
    %396 = vmatpush2.bf16.msra.mxu0 0
    %397 = vmatprep.subr.bf16.mxu0 0
    %398 = vmatpush2.bf16.msra.mxu0 0
    %399 = vmatprep.subr.bf16.mxu0 0
    %400 = vmatpush2.bf16.msra.mxu0 0
    %401 = vmatprep.subr.bf16.mxu0 0
    %402 = vmatpush2.bf16.msra.mxu0 0
    %403 = vmatprep.subr.bf16.mxu0 0
    %404 = vmatpush2.bf16.msra.mxu0 0
    %405 = vmatprep.subr.bf16.mxu0 0
    %406 = vmatpush2.bf16.msra.mxu0 0
    %407 = vmatprep.subr.bf16.mxu0 0
    %408 = vmatpush2.bf16.msra.mxu0 0
    %409 = vmatprep.mubr.bf16.mxu0 0
    %410 = vmatmul.mubr.bf16.gmra.mxu0 %v334
    %v411 = vpop.f32.mrf.mxu0
    %v412 = vadd.f32 %v164, %v411
    %v413 = vpop.f32.mrf.mxu0
    %v414 = vadd.f32 %v168, %v413
    %v415 = vpop.f32.mrf.mxu0
    %v416 = vpop.f32.mrf.mxu0
    %417 = vdwg.mxu0
    %418 = vmatprep.subr.bf16.mxu0 0
    %419 = vmatpush1.bf16.msra.mxu0 0
    %420 = vmatprep.subr.bf16.mxu0 0
    %421 = vmatpush1.bf16.msra.mxu0 0
    %422 = vmatprep.subr.bf16.mxu0 0
    %423 = vmatpush1.bf16.msra.mxu0 0
    %424 = vmatprep.subr.bf16.mxu0 0
    %425 = vmatpush1.bf16.msra.mxu0 0
    %426 = vmatprep.subr.bf16.mxu0 %v302
    %427 = vmatpush1.bf16.msra.mxu0 %v301
    %428 = vmatprep.subr.bf16.mxu0 %v295
    %429 = vmatpush1.bf16.msra.mxu0 %v294
    %430 = vmatprep.subr.bf16.mxu0 %v288
    %431 = vmatpush1.bf16.msra.mxu0 %v287
    %432 = vmatprep.subr.bf16.mxu0 %v281
    %433 = vmatpush1.bf16.msra.mxu0 %v280
    %434 = vmatprep.subr.bf16.mxu0 0
    %435 = vmatpush2.bf16.msra.mxu0 0
    %436 = vmatprep.subr.bf16.mxu0 0
    %437 = vmatpush2.bf16.msra.mxu0 0
    %438 = vmatprep.subr.bf16.mxu0 0
    %439 = vmatpush2.bf16.msra.mxu0 0
    %440 = vmatprep.subr.bf16.mxu0 0
    %441 = vmatpush2.bf16.msra.mxu0 0
    %442 = vmatprep.subr.bf16.mxu0 0
    %443 = vmatpush2.bf16.msra.mxu0 0
    %444 = vmatprep.subr.bf16.mxu0 0
    %445 = vmatpush2.bf16.msra.mxu0 0
    %446 = vmatprep.subr.bf16.mxu0 0
    %447 = vmatpush2.bf16.msra.mxu0 0
    %448 = vmatprep.subr.bf16.mxu0 0
    %449 = vmatpush2.bf16.msra.mxu0 0
    %450 = vmatprep.mubr.bf16.mxu0 0
    %451 = vmatmul.mubr.bf16.gmra.mxu0 %v334
    %v452 = vpop.f32.mrf.mxu0
    %v453 = vadd.f32 %v172, %v452
    %v454 = vpop.f32.mrf.mxu0
    %v455 = vadd.f32 %v176, %v454
    %v456 = vpop.f32.mrf.mxu0
    %v457 = vpop.f32.mrf.mxu0
    %458 = vdwg.mxu0
    %459 = vmatprep.subr.bf16.mxu0 0
    %460 = vmatpush1.bf16.msra.mxu0 0
    %461 = vmatprep.subr.bf16.mxu0 0
    %462 = vmatpush1.bf16.msra.mxu0 0
    %463 = vmatprep.subr.bf16.mxu0 0
    %464 = vmatpush1.bf16.msra.mxu0 0
    %465 = vmatprep.subr.bf16.mxu0 0
    %466 = vmatpush1.bf16.msra.mxu0 0
    %467 = vmatprep.subr.bf16.mxu0 0
    %468 = vmatpush1.bf16.msra.mxu0 %v303
    %469 = vmatprep.subr.bf16.mxu0 0
    %470 = vmatpush1.bf16.msra.mxu0 %v296
    %471 = vmatprep.subr.bf16.mxu0 0
    %472 = vmatpush1.bf16.msra.mxu0 %v289
    %473 = vmatprep.subr.bf16.mxu0 0
    %474 = vmatpush1.bf16.msra.mxu0 %v282
    %475 = vmatprep.subr.bf16.mxu0 0
    %476 = vmatpush2.bf16.msra.mxu0 0
    %477 = vmatprep.subr.bf16.mxu0 0
    %478 = vmatpush2.bf16.msra.mxu0 0
    %479 = vmatprep.subr.bf16.mxu0 0
    %480 = vmatpush2.bf16.msra.mxu0 0
    %481 = vmatprep.subr.bf16.mxu0 0
    %482 = vmatpush2.bf16.msra.mxu0 0
    %483 = vmatprep.subr.bf16.mxu0 0
    %484 = vmatpush2.bf16.msra.mxu0 0
    %485 = vmatprep.subr.bf16.mxu0 0
    %486 = vmatpush2.bf16.msra.mxu0 0
    %487 = vmatprep.subr.bf16.mxu0 0
    %488 = vmatpush2.bf16.msra.mxu0 0
    %489 = vmatprep.subr.bf16.mxu0 0
    %490 = vmatpush2.bf16.msra.mxu0 0
    %491 = vmatprep.mubr.bf16.mxu0 0
    %492 = vmatmul.mubr.bf16.gmra.mxu0 %v334
    %v493 = vpop.f32.mrf.mxu0
    %v494 = vadd.f32 %v180, %v493
    %v495 = vpop.f32.mrf.mxu0
    %v496 = vpop.f32.mrf.mxu0
    %v497 = vpop.f32.mrf.mxu0
    %498 = vdwg.mxu0
    %v499 = vmax.f32 %v371, 0.0
    %v500 = vmax.f32 %v373, 0.0
    %v501 = vmax.f32 %v412, 0.0
    %v502 = vmax.f32 %v414, 0.0
    %v503 = vmax.f32 %v453, 0.0
    %v504 = vmax.f32 %v455, 0.0
    %v505 = vmax.f32 %v494, 0.0
    %506 = vst [vmem:[%s5] sm:$0xff] %v499
    %507 = vst [vmem:[%s5 + $0x8] sm:$0xff] %v500
    %508 = vst [vmem:[%s5 + $0x10] sm:$0xff] %v501
    %509 = vst [vmem:[%s5 + $0x18] sm:$0xff] %v502
    %510 = vst [vmem:[%s5 + $0x20] sm:$0xff] %v503
    %511 = vst [vmem:[%s5 + $0x28] sm:$0xff] %v504
    %vm512 = vcmask 261120
    %513 = vst.msk [vmem:[%s5 + $0x30] sm:$0xff] %vm512, %v505
    // Predicated region
    $region30: #{net_forward.1} parent=1 // pred_check
      _
    $region31: #{net_forward.1} parent=1 // pred_check_branch
      %515 = sbr.rel (0) target = $region33
    $region32: #{net_forward.1} parent=1 // pred_region
      _
    $region33: #{net_forward.1} parent=1 // pred_fallthru
      _
    // Predicated region
    $region34: #{net_forward.1} parent=1 // pred_check
      _
    $region35: #{net_forward.1} parent=1 // pred_check_branch
      %517 = sbr.rel (0) target = $region37
    $region36: #{net_forward.1} parent=1 // pred_region
      _
    $region37: #{net_forward.1} parent=1 // pred_fallthru
      _
    %518 = vsyncpa [#allocation3], 1
    %519 = vsyncpa [#allocation5], 1

</llo_original>
